<compile_context>
chip_gen: v7x
topology: tpu7x:2x2x1
jax: 0.10.0
libtpu: 0.0.40
codegen_flags: <defaults>
</compile_context>

<pallas_src>
import jax
import jax.numpy as jnp
from jax.experimental import pallas as pl
from jax.experimental.pallas import tpu as pltpu

HIDDEN_DIM = 15
NUM_LAYERS = 7
_SUBLANE = 8
_LANE = 128


def _round_up(n, m):
    return ((n + m - 1) // m) * m


def _mlp_kernel(x_ref,
                w1_ref, b1_ref, w2_ref, b2_ref, w3_ref, b3_ref,
                w4_ref, b4_ref, w5_ref, b5_ref, w6_ref, b6_ref,
                w7_ref, b7_ref,
                out_ref):
    """Fused MLP on one (features, TILE_B) activation tile.

    Weights are (out, in) (PyTorch layout), so each layer computes W @ h.
    bf16 MXU inputs, f32 accumulation; bias add + ReLU on the f32 accumulator.
    """
    h = x_ref[...]                                           # (IN_PAD, TILE_B) bf16

    def layer(h_bf16, w_ref, b_ref, relu):
        acc = jnp.dot(w_ref[...], h_bf16,
                      preferred_element_type=jnp.float32)    # f32 accumulator
        acc = acc + b_ref[...]                               # (out, 1) broadcasts over lanes
        if relu:
            acc = jnp.maximum(acc, 0.0)
        return acc

    h = layer(h, w1_ref, b1_ref, True).astype(jnp.bfloat16)
    h = layer(h, w2_ref, b2_ref, True).astype(jnp.bfloat16)
    h = layer(h, w3_ref, b3_ref, True).astype(jnp.bfloat16)
    h = layer(h, w4_ref, b4_ref, True).astype(jnp.bfloat16)
    h = layer(h, w5_ref, b5_ref, True).astype(jnp.bfloat16)
    h = layer(h, w6_ref, b6_ref, True).astype(jnp.bfloat16)
    out = layer(h, w7_ref, b7_ref, False)                    # final layer: no ReLU, f32
    out_ref[...] = out.astype(out_ref.dtype)


def mlp_forward(x, params, *, max_tile_b=512):
    """x: (batch, input_dim) float32.
    params: 7 tuples (W, b), W of shape (out, in) (PyTorch nn.Linear layout),
    b of shape (out,), float32.  Returns (batch, output_dim) float32."""
    batch, in_dim = x.shape
    out_dim = params[-1][0].shape[0]

    # Pad feature dims to sublane multiples (8); batch to lane multiples (128).
    dims = [in_dim] + [w.shape[0] for w, _ in params]
    dims_pad = [_round_up(d, _SUBLANE) for d in dims]
    in_pad, out_pad = dims_pad[0], dims_pad[-1]

    tile_b = min(max_tile_b, _round_up(batch, _LANE))
    batch_pad = _round_up(batch, tile_b)
    grid = (batch_pad // tile_b,)

    # Activations: (features, batch) with batch on the lane axis, streamed bf16.
    x_t = jnp.pad(x.T.astype(jnp.bfloat16),
                  ((0, in_pad - in_dim), (0, batch_pad - batch)))

    # Weights (out, in) zero-padded bf16; biases (out_pad, 1) f32.
    flat_args = []
    for (w, b), d_in, d_out in zip(params, dims_pad[:-1], dims_pad[1:]):
        w_p = jnp.pad(w.astype(jnp.bfloat16),
                      ((0, d_out - w.shape[0]), (0, d_in - w.shape[1])))
        b_p = jnp.pad(b.astype(jnp.float32),
                      (0, d_out - b.shape[0])).reshape(d_out, 1)
        flat_args.extend([w_p, b_p])

    # x/out are tiled over the batch grid; weights/biases are full-array blocks
    # with a constant index_map so they stay resident in VMEM across all steps.
    in_specs = [pl.BlockSpec((in_pad, tile_b), lambda i: (0, i))]
    for a in flat_args:
        in_specs.append(pl.BlockSpec(a.shape, lambda i: (0, 0)))
    out_specs = pl.BlockSpec((out_pad, tile_b), lambda i: (0, i))

    out_t = pl.pallas_call(
        _mlp_kernel,
        grid=grid,
        in_specs=in_specs,
        out_specs=out_specs,
        out_shape=jax.ShapeDtypeStruct((out_pad, batch_pad), jnp.float32),
        compiler_params=pltpu.CompilerParams(
            dimension_semantics=("parallel",)),
    )(x_t, *flat_args)

    return out_t[:out_dim, :batch].T


def init_params(key, input_dim, output_dim, hidden_dim):
    """Deterministic init mirroring PyTorch nn.Linear shapes: W is (out, in)."""
    dims = [input_dim] + [hidden_dim] * (NUM_LAYERS - 1) + [output_dim]
    params = []
    for i in range(NUM_LAYERS):
        fan_in, fan_out = dims[i], dims[i + 1]
        key, kw, kb = jax.random.split(key, 3)
        bound = 1.0 / jnp.sqrt(fan_in)
        w = jax.random.uniform(kw, (fan_out, fan_in), jnp.float32, -bound, bound)
        b = jax.random.uniform(kb, (fan_out,), jnp.float32, -bound, bound)
        params.append((w, b))
    return params


def mlp_reference_f32(x, params):
    h = x
    for i, (w, b) in enumerate(params):
        h = h @ w.T + b
        if i < len(params) - 1:
            h = jnp.maximum(h, 0.0)
    return h


def mlp_reference_bf16(x, params):
    """Mirrors the kernel's numerics: bf16 MXU inputs, f32 accumulation."""
    h = x.astype(jnp.bfloat16)
    n = len(params)
    for i, (w, b) in enumerate(params):
        acc = jnp.dot(h, w.astype(jnp.bfloat16).T,
                      preferred_element_type=jnp.float32) + b
        if i < n - 1:
            h = jnp.maximum(acc, 0.0).astype(jnp.bfloat16)
        else:
            h = acc
    return h


if __name__ == "__main__":
    input_dim, output_dim, batch = 8, 4, 2

    key = jax.random.PRNGKey(0)
    key, kx = jax.random.split(key)
    x = jax.random.normal(kx, (batch, input_dim), jnp.float32)
    params = init_params(key, input_dim, output_dim, HIDDEN_DIM)

    out = jax.block_until_ready(mlp_forward(x, params))
    assert out.shape == (batch, output_dim)
    assert jnp.allclose(out, mlp_reference_bf16(x, params), atol=1e-4, rtol=1e-4), \
        "mismatch vs bf16-mirrored reference"
    assert jnp.allclose(out, mlp_reference_f32(x, params), atol=1e-1, rtol=1e-1), \
        "mismatch vs f32 reference"

    # Exercise the tiled/padded batch path (1000 rows -> padded 1024, grid=(2,)).
    key, kx2 = jax.random.split(key)
    x_big = jax.random.normal(kx2, (1000, input_dim), jnp.float32)
    out_big = jax.block_until_ready(mlp_forward(x_big, params))
    assert out_big.shape == (1000, output_dim)
    assert jnp.allclose(out_big, mlp_reference_bf16(x_big, params),
                        atol=1e-4, rtol=1e-4), "mismatch on tiled batch"

    print("KERNEL_OK")
</pallas_src>

<mosaic_0001>
module attributes {stable_mosaic.version = 11 : i64} {
  func.func @_mlp_kernel(%arg0: i32, %arg1: memref<8x128xbf16, #tpu.memory_space<vmem>>, %arg2: memref<16x8xbf16, #tpu.memory_space<vmem>>, %arg3: memref<16x1xf32, #tpu.memory_space<vmem>>, %arg4: memref<16x16xbf16, #tpu.memory_space<vmem>>, %arg5: memref<16x1xf32, #tpu.memory_space<vmem>>, %arg6: memref<16x16xbf16, #tpu.memory_space<vmem>>, %arg7: memref<16x1xf32, #tpu.memory_space<vmem>>, %arg8: memref<16x16xbf16, #tpu.memory_space<vmem>>, %arg9: memref<16x1xf32, #tpu.memory_space<vmem>>, %arg10: memref<16x16xbf16, #tpu.memory_space<vmem>>, %arg11: memref<16x1xf32, #tpu.memory_space<vmem>>, %arg12: memref<16x16xbf16, #tpu.memory_space<vmem>>, %arg13: memref<16x1xf32, #tpu.memory_space<vmem>>, %arg14: memref<8x16xbf16, #tpu.memory_space<vmem>>, %arg15: memref<8x1xf32, #tpu.memory_space<vmem>>, %arg16: memref<8x128xf32, #tpu.memory_space<vmem>>) attributes {dimension_semantics = [#tpu.dimension_semantics<parallel>], iteration_bounds = array<i64: 1>, scalar_prefetch = 0 : i64, scratch_operands = 0 : i64, tpu.core_type = #tpu.core_type<tc>, window_params = [{transform_indices = @transform_0, window_bounds = array<i64: 8, 128>}, {pipeline_mode = #tpu.pipeline_mode<synchronous>, transform_indices = @transform_1, window_bounds = array<i64: 16, 8>}, {pipeline_mode = #tpu.pipeline_mode<synchronous>, transform_indices = @transform_2, window_bounds = array<i64: 16, 1>}, {pipeline_mode = #tpu.pipeline_mode<synchronous>, transform_indices = @transform_3, window_bounds = array<i64: 16, 16>}, {pipeline_mode = #tpu.pipeline_mode<synchronous>, transform_indices = @transform_4, window_bounds = array<i64: 16, 1>}, {pipeline_mode = #tpu.pipeline_mode<synchronous>, transform_indices = @transform_5, window_bounds = array<i64: 16, 16>}, {pipeline_mode = #tpu.pipeline_mode<synchronous>, transform_indices = @transform_6, window_bounds = array<i64: 16, 1>}, {pipeline_mode = #tpu.pipeline_mode<synchronous>, transform_indices = @transform_7, window_bounds = array<i64: 16, 16>}, {pipeline_mode = #tpu.pipeline_mode<synchronous>, transform_indices = @transform_8, window_bounds = array<i64: 16, 1>}, {pipeline_mode = #tpu.pipeline_mode<synchronous>, transform_indices = @transform_9, window_bounds = array<i64: 16, 16>}, {pipeline_mode = #tpu.pipeline_mode<synchronous>, transform_indices = @transform_10, window_bounds = array<i64: 16, 1>}, {pipeline_mode = #tpu.pipeline_mode<synchronous>, transform_indices = @transform_11, window_bounds = array<i64: 16, 16>}, {pipeline_mode = #tpu.pipeline_mode<synchronous>, transform_indices = @transform_12, window_bounds = array<i64: 16, 1>}, {pipeline_mode = #tpu.pipeline_mode<synchronous>, transform_indices = @transform_13, window_bounds = array<i64: 8, 16>}, {pipeline_mode = #tpu.pipeline_mode<synchronous>, transform_indices = @transform_14, window_bounds = array<i64: 8, 1>}, {transform_indices = @transform_15, window_bounds = array<i64: 8, 128>}]} {
    %c0 = arith.constant 0 : index
    %c0_0 = arith.constant 0 : index
    %0 = vector.load %arg1[%c0, %c0_0] : memref<8x128xbf16, #tpu.memory_space<vmem>>, vector<8x128xbf16>
    %c0_1 = arith.constant 0 : index
    %c0_2 = arith.constant 0 : index
    %1 = vector.load %arg2[%c0_1, %c0_2] : memref<16x8xbf16, #tpu.memory_space<vmem>>, vector<16x8xbf16>
    %cst = arith.constant dense<0.000000e+00> : vector<16x128xf32>
    %2 = tpu.matmul %1, %0, %cst {dimension_numbers = #tpu.dot_dimension_numbers<[1], [0], [0], [1], [0, 0, 1, 1], [], []>} : vector<16x8xbf16>, vector<8x128xbf16>, vector<16x128xf32> -> vector<16x128xf32>
    %c0_3 = arith.constant 0 : index
    %c0_4 = arith.constant 0 : index
    %3 = vector.load %arg3[%c0_3, %c0_4] : memref<16x1xf32, #tpu.memory_space<vmem>>, vector<16x1xf32>
    %4 = vector.broadcast %3 : vector<16x1xf32> to vector<16x128xf32>
    %5 = arith.addf %2, %4 : vector<16x128xf32>
    %cst_5 = arith.constant 0.000000e+00 : f32
    %6 = vector.broadcast %cst_5 : f32 to vector<16x128xf32>
    %7 = arith.maximumf %5, %6 : vector<16x128xf32>
    %8 = arith.truncf %7 : vector<16x128xf32> to vector<16x128xbf16>
    %c0_6 = arith.constant 0 : index
    %c0_7 = arith.constant 0 : index
    %9 = vector.load %arg4[%c0_6, %c0_7] : memref<16x16xbf16, #tpu.memory_space<vmem>>, vector<16x16xbf16>
    %cst_8 = arith.constant dense<0.000000e+00> : vector<16x128xf32>
    %10 = tpu.matmul %9, %8, %cst_8 {dimension_numbers = #tpu.dot_dimension_numbers<[1], [0], [0], [1], [0, 0, 1, 1], [], []>} : vector<16x16xbf16>, vector<16x128xbf16>, vector<16x128xf32> -> vector<16x128xf32>
    %c0_9 = arith.constant 0 : index
    %c0_10 = arith.constant 0 : index
    %11 = vector.load %arg5[%c0_9, %c0_10] : memref<16x1xf32, #tpu.memory_space<vmem>>, vector<16x1xf32>
    %12 = vector.broadcast %11 : vector<16x1xf32> to vector<16x128xf32>
    %13 = arith.addf %10, %12 : vector<16x128xf32>
    %cst_11 = arith.constant 0.000000e+00 : f32
    %14 = vector.broadcast %cst_11 : f32 to vector<16x128xf32>
    %15 = arith.maximumf %13, %14 : vector<16x128xf32>
    %16 = arith.truncf %15 : vector<16x128xf32> to vector<16x128xbf16>
    %c0_12 = arith.constant 0 : index
    %c0_13 = arith.constant 0 : index
    %17 = vector.load %arg6[%c0_12, %c0_13] : memref<16x16xbf16, #tpu.memory_space<vmem>>, vector<16x16xbf16>
    %cst_14 = arith.constant dense<0.000000e+00> : vector<16x128xf32>
    %18 = tpu.matmul %17, %16, %cst_14 {dimension_numbers = #tpu.dot_dimension_numbers<[1], [0], [0], [1], [0, 0, 1, 1], [], []>} : vector<16x16xbf16>, vector<16x128xbf16>, vector<16x128xf32> -> vector<16x128xf32>
    %c0_15 = arith.constant 0 : index
    %c0_16 = arith.constant 0 : index
    %19 = vector.load %arg7[%c0_15, %c0_16] : memref<16x1xf32, #tpu.memory_space<vmem>>, vector<16x1xf32>
    %20 = vector.broadcast %19 : vector<16x1xf32> to vector<16x128xf32>
    %21 = arith.addf %18, %20 : vector<16x128xf32>
    %cst_17 = arith.constant 0.000000e+00 : f32
    %22 = vector.broadcast %cst_17 : f32 to vector<16x128xf32>
    %23 = arith.maximumf %21, %22 : vector<16x128xf32>
    %24 = arith.truncf %23 : vector<16x128xf32> to vector<16x128xbf16>
    %c0_18 = arith.constant 0 : index
    %c0_19 = arith.constant 0 : index
    %25 = vector.load %arg8[%c0_18, %c0_19] : memref<16x16xbf16, #tpu.memory_space<vmem>>, vector<16x16xbf16>
    %cst_20 = arith.constant dense<0.000000e+00> : vector<16x128xf32>
    %26 = tpu.matmul %25, %24, %cst_20 {dimension_numbers = #tpu.dot_dimension_numbers<[1], [0], [0], [1], [0, 0, 1, 1], [], []>} : vector<16x16xbf16>, vector<16x128xbf16>, vector<16x128xf32> -> vector<16x128xf32>
    %c0_21 = arith.constant 0 : index
    %c0_22 = arith.constant 0 : index
    %27 = vector.load %arg9[%c0_21, %c0_22] : memref<16x1xf32, #tpu.memory_space<vmem>>, vector<16x1xf32>
    %28 = vector.broadcast %27 : vector<16x1xf32> to vector<16x128xf32>
    %29 = arith.addf %26, %28 : vector<16x128xf32>
    %cst_23 = arith.constant 0.000000e+00 : f32
    %30 = vector.broadcast %cst_23 : f32 to vector<16x128xf32>
    %31 = arith.maximumf %29, %30 : vector<16x128xf32>
    %32 = arith.truncf %31 : vector<16x128xf32> to vector<16x128xbf16>
    %c0_24 = arith.constant 0 : index
    %c0_25 = arith.constant 0 : index
    %33 = vector.load %arg10[%c0_24, %c0_25] : memref<16x16xbf16, #tpu.memory_space<vmem>>, vector<16x16xbf16>
    %cst_26 = arith.constant dense<0.000000e+00> : vector<16x128xf32>
    %34 = tpu.matmul %33, %32, %cst_26 {dimension_numbers = #tpu.dot_dimension_numbers<[1], [0], [0], [1], [0, 0, 1, 1], [], []>} : vector<16x16xbf16>, vector<16x128xbf16>, vector<16x128xf32> -> vector<16x128xf32>
    %c0_27 = arith.constant 0 : index
    %c0_28 = arith.constant 0 : index
    %35 = vector.load %arg11[%c0_27, %c0_28] : memref<16x1xf32, #tpu.memory_space<vmem>>, vector<16x1xf32>
    %36 = vector.broadcast %35 : vector<16x1xf32> to vector<16x128xf32>
    %37 = arith.addf %34, %36 : vector<16x128xf32>
    %cst_29 = arith.constant 0.000000e+00 : f32
    %38 = vector.broadcast %cst_29 : f32 to vector<16x128xf32>
    %39 = arith.maximumf %37, %38 : vector<16x128xf32>
    %40 = arith.truncf %39 : vector<16x128xf32> to vector<16x128xbf16>
    %c0_30 = arith.constant 0 : index
    %c0_31 = arith.constant 0 : index
    %41 = vector.load %arg12[%c0_30, %c0_31] : memref<16x16xbf16, #tpu.memory_space<vmem>>, vector<16x16xbf16>
    %cst_32 = arith.constant dense<0.000000e+00> : vector<16x128xf32>
    %42 = tpu.matmul %41, %40, %cst_32 {dimension_numbers = #tpu.dot_dimension_numbers<[1], [0], [0], [1], [0, 0, 1, 1], [], []>} : vector<16x16xbf16>, vector<16x128xbf16>, vector<16x128xf32> -> vector<16x128xf32>
    %c0_33 = arith.constant 0 : index
    %c0_34 = arith.constant 0 : index
    %43 = vector.load %arg13[%c0_33, %c0_34] : memref<16x1xf32, #tpu.memory_space<vmem>>, vector<16x1xf32>
    %44 = vector.broadcast %43 : vector<16x1xf32> to vector<16x128xf32>
    %45 = arith.addf %42, %44 : vector<16x128xf32>
    %cst_35 = arith.constant 0.000000e+00 : f32
    %46 = vector.broadcast %cst_35 : f32 to vector<16x128xf32>
    %47 = arith.maximumf %45, %46 : vector<16x128xf32>
    %48 = arith.truncf %47 : vector<16x128xf32> to vector<16x128xbf16>
    %c0_36 = arith.constant 0 : index
    %c0_37 = arith.constant 0 : index
    %49 = vector.load %arg14[%c0_36, %c0_37] : memref<8x16xbf16, #tpu.memory_space<vmem>>, vector<8x16xbf16>
    %cst_38 = arith.constant dense<0.000000e+00> : vector<8x128xf32>
    %50 = tpu.matmul %49, %48, %cst_38 {dimension_numbers = #tpu.dot_dimension_numbers<[1], [0], [0], [1], [0, 0, 1, 1], [], []>} : vector<8x16xbf16>, vector<16x128xbf16>, vector<8x128xf32> -> vector<8x128xf32>
    %c0_39 = arith.constant 0 : index
    %c0_40 = arith.constant 0 : index
    %51 = vector.load %arg15[%c0_39, %c0_40] : memref<8x1xf32, #tpu.memory_space<vmem>>, vector<8x1xf32>
    %52 = vector.broadcast %51 : vector<8x1xf32> to vector<8x128xf32>
    %53 = arith.addf %50, %52 : vector<8x128xf32>
    %c0_41 = arith.constant 0 : index
    %c0_42 = arith.constant 0 : index
    %54 = vector.load %arg16[%c0_41, %c0_42] : memref<8x128xf32, #tpu.memory_space<vmem>>, vector<8x128xf32>
    tpu.vector_store %arg16[%c0_41, %c0_42], %53 {strides = array<i32>} : memref<8x128xf32, #tpu.memory_space<vmem>>, vector<8x128xf32>,
    return
  }
  func.func @transform_0(%arg0: i32) -> (i32, i32) {
    %c0_i32 = arith.constant 0 : i32
    %c0_i32_0 = arith.constant 0 : i32
    return %c0_i32, %arg0 : i32, i32
  }
  func.func @transform_1(%arg0: i32) -> (i32, i32) {
    %c0_i32 = arith.constant 0 : i32
    %c0_i32_0 = arith.constant 0 : i32
    %c0_i32_1 = arith.constant 0 : i32
    return %c0_i32, %c0_i32_0 : i32, i32
  }
  func.func @transform_2(%arg0: i32) -> (i32, i32) {
    %c0_i32 = arith.constant 0 : i32
    %c0_i32_0 = arith.constant 0 : i32
    %c0_i32_1 = arith.constant 0 : i32
    return %c0_i32, %c0_i32_0 : i32, i32
  }
  func.func @transform_3(%arg0: i32) -> (i32, i32) {
    %c0_i32 = arith.constant 0 : i32
    %c0_i32_0 = arith.constant 0 : i32
    %c0_i32_1 = arith.constant 0 : i32
    return %c0_i32, %c0_i32_0 : i32, i32
  }
  func.func @transform_4(%arg0: i32) -> (i32, i32) {
    %c0_i32 = arith.constant 0 : i32
    %c0_i32_0 = arith.constant 0 : i32
    %c0_i32_1 = arith.constant 0 : i32
    return %c0_i32, %c0_i32_0 : i32, i32
  }
  func.func @transform_5(%arg0: i32) -> (i32, i32) {
    %c0_i32 = arith.constant 0 : i32
    %c0_i32_0 = arith.constant 0 : i32
    %c0_i32_1 = arith.constant 0 : i32
    return %c0_i32, %c0_i32_0 : i32, i32
  }
  func.func @transform_6(%arg0: i32) -> (i32, i32) {
    %c0_i32 = arith.constant 0 : i32
    %c0_i32_0 = arith.constant 0 : i32
    %c0_i32_1 = arith.constant 0 : i32
    return %c0_i32, %c0_i32_0 : i32, i32
  }
  func.func @transform_7(%arg0: i32) -> (i32, i32) {
    %c0_i32 = arith.constant 0 : i32
    %c0_i32_0 = arith.constant 0 : i32
    %c0_i32_1 = arith.constant 0 : i32
    return %c0_i32, %c0_i32_0 : i32, i32
  }
  func.func @transform_8(%arg0: i32) -> (i32, i32) {
    %c0_i32 = arith.constant 0 : i32
    %c0_i32_0 = arith.constant 0 : i32
    %c0_i32_1 = arith.constant 0 : i32
    return %c0_i32, %c0_i32_0 : i32, i32
  }
  func.func @transform_9(%arg0: i32) -> (i32, i32) {
    %c0_i32 = arith.constant 0 : i32
    %c0_i32_0 = arith.constant 0 : i32
    %c0_i32_1 = arith.constant 0 : i32
    return %c0_i32, %c0_i32_0 : i32, i32
  }
  func.func @transform_10(%arg0: i32) -> (i32, i32) {
    %c0_i32 = arith.constant 0 : i32
    %c0_i32_0 = arith.constant 0 : i32
    %c0_i32_1 = arith.constant 0 : i32
    return %c0_i32, %c0_i32_0 : i32, i32
  }
  func.func @transform_11(%arg0: i32) -> (i32, i32) {
    %c0_i32 = arith.constant 0 : i32
    %c0_i32_0 = arith.constant 0 : i32
    %c0_i32_1 = arith.constant 0 : i32
    return %c0_i32, %c0_i32_0 : i32, i32
  }
  func.func @transform_12(%arg0: i32) -> (i32, i32) {
    %c0_i32 = arith.constant 0 : i32
    %c0_i32_0 = arith.constant 0 : i32
    %c0_i32_1 = arith.constant 0 : i32
    return %c0_i32, %c0_i32_0 : i32, i32
  }
  func.func @transform_13(%arg0: i32) -> (i32, i32) {
    %c0_i32 = arith.constant 0 : i32
    %c0_i32_0 = arith.constant 0 : i32
    %c0_i32_1 = arith.constant 0 : i32
    return %c0_i32, %c0_i32_0 : i32, i32
  }
  func.func @transform_14(%arg0: i32) -> (i32, i32) {
    %c0_i32 = arith.constant 0 : i32
    %c0_i32_0 = arith.constant 0 : i32
    %c0_i32_1 = arith.constant 0 : i32
    return %c0_i32, %c0_i32_0 : i32, i32
  }
  func.func @transform_15(%arg0: i32) -> (i32, i32) {
    %c0_i32 = arith.constant 0 : i32
    %c0_i32_0 = arith.constant 0 : i32
    return %c0_i32, %arg0 : i32, i32
  }
}

</mosaic_0001>

<llo_original>
// kernel: tpu_custom_call.1
$region0: #{tpu_custom_call.1}
  #allocation0 [shape = 'u32[]', space=smem, size = 0x4, offset = 0x4, fixed_abs, tag = 'smem constant byte address 0x4 - core index']
  #allocation1 [shape = 'u32[144,128]{1,0:T(1,128)}', space=vmem, size = 0x12000, scoped, tag = 'internal scratch']
  %s0 = inlined_call_operand.vmem [shape: bf16[8,128], index: 0, kind: input, shape index: {}]
  %s1 = inlined_call_operand.vmem [shape: bf16[16,8], index: 1, kind: input, shape index: {}]
  %s2 = inlined_call_operand.vmem [shape: f32[16,1], index: 2, kind: input, shape index: {}]
  %s3 = inlined_call_operand.vmem [shape: bf16[16,16], index: 3, kind: input, shape index: {}]
  %s4 = inlined_call_operand.vmem [shape: f32[16,1], index: 4, kind: input, shape index: {}]
  %s5 = inlined_call_operand.vmem [shape: bf16[16,16], index: 5, kind: input, shape index: {}]
  %s6 = inlined_call_operand.vmem [shape: f32[16,1], index: 6, kind: input, shape index: {}]
  %s7 = inlined_call_operand.vmem [shape: bf16[16,16], index: 7, kind: input, shape index: {}]
  %s8 = inlined_call_operand.vmem [shape: f32[16,1], index: 8, kind: input, shape index: {}]
  %s9 = inlined_call_operand.vmem [shape: bf16[16,16], index: 9, kind: input, shape index: {}]
  %s10 = inlined_call_operand.vmem [shape: f32[16,1], index: 10, kind: input, shape index: {}]
  %s11 = inlined_call_operand.vmem [shape: bf16[16,16], index: 11, kind: input, shape index: {}]
  %s12 = inlined_call_operand.vmem [shape: f32[16,1], index: 12, kind: input, shape index: {}]
  %s13 = inlined_call_operand.vmem [shape: bf16[8,16], index: 13, kind: input, shape index: {}]
  %s14 = inlined_call_operand.vmem [shape: f32[8,1], index: 14, kind: input, shape index: {}]
  %s15 = inlined_call_operand.hbm [shape: f32[8,128], index: 15, kind: output, shape index: {}]
  %s16 = sld [smem:[#allocation0]]
  $region70: #{tpu_custom_call.1} parent=0
    _
  %s18 = ssub.s32 1, %s16
  %s19 = scalar_select 0, %s18, %s16
  $region1: #{tpu_custom_call.1} parent=0
    #allocation2 [shape = 'u8[4096]{0}', space=vmem, size = 0x1000, scoped, tag = 'output window, operand 0, single buffered']
    #allocation3 [shape = 's32[1]{0}', space=sflag, size = 0x4, scoped, tag = 'scoped memory for tpu_custom_call.1']
    %20 = vsyncpa [#allocation3], 0
    // Predicated region
    $region2: #{tpu_custom_call.1} parent=1 // pred_check
      _
    $region3: #{tpu_custom_call.1} parent=1 // pred_check_branch
      %22 = sbr.rel (0) target = $region5
    $region4: #{tpu_custom_call.1} parent=1 // pred_region
      _
    $region5: #{tpu_custom_call.1} parent=1 // pred_fallthru
      _
    // Predicated region
    $region6: #{tpu_custom_call.1} parent=1 // pred_check
      _
    $region7: #{tpu_custom_call.1} parent=1 // pred_check_branch
      %24 = sbr.rel (0) target = $region9
    $region8: #{tpu_custom_call.1} parent=1 // pred_region
      _
    $region9: #{tpu_custom_call.1} parent=1 // pred_fallthru
      _
    // Predicated region
    $region10: #{tpu_custom_call.1} parent=1 // pred_check
      _
    $region11: #{tpu_custom_call.1} parent=1 // pred_check_branch
      %26 = sbr.rel (0) target = $region13
    $region12: #{tpu_custom_call.1} parent=1 // pred_region
      _
    $region13: #{tpu_custom_call.1} parent=1 // pred_fallthru
      _
    // Predicated region
    $region14: #{tpu_custom_call.1} parent=1 // pred_check
      _
    $region15: #{tpu_custom_call.1} parent=1 // pred_check_branch
      %28 = sbr.rel (0) target = $region17
    $region16: #{tpu_custom_call.1} parent=1 // pred_region
      _
    $region17: #{tpu_custom_call.1} parent=1 // pred_fallthru
      _
    // Predicated region
    $region18: #{tpu_custom_call.1} parent=1 // pred_check
      _
    $region19: #{tpu_custom_call.1} parent=1 // pred_check_branch
      %30 = sbr.rel (0) target = $region21
    $region20: #{tpu_custom_call.1} parent=1 // pred_region
      _
    $region21: #{tpu_custom_call.1} parent=1 // pred_fallthru
      _
    // Predicated region
    $region22: #{tpu_custom_call.1} parent=1 // pred_check
      _
    $region23: #{tpu_custom_call.1} parent=1 // pred_check_branch
      %32 = sbr.rel (0) target = $region25
    $region24: #{tpu_custom_call.1} parent=1 // pred_region
      _
    $region25: #{tpu_custom_call.1} parent=1 // pred_fallthru
      _
    // Predicated region
    $region26: #{tpu_custom_call.1} parent=1 // pred_check
      _
    $region27: #{tpu_custom_call.1} parent=1 // pred_check_branch
      %34 = sbr.rel (0) target = $region29
    $region28: #{tpu_custom_call.1} parent=1 // pred_region
      _
    $region29: #{tpu_custom_call.1} parent=1 // pred_fallthru
      _
    // Predicated region
    $region30: #{tpu_custom_call.1} parent=1 // pred_check
      _
    $region31: #{tpu_custom_call.1} parent=1 // pred_check_branch
      %36 = sbr.rel (0) target = $region33
    $region32: #{tpu_custom_call.1} parent=1 // pred_region
      _
    $region33: #{tpu_custom_call.1} parent=1 // pred_fallthru
      _
    // Predicated region
    $region34: #{tpu_custom_call.1} parent=1 // pred_check
      _
    $region35: #{tpu_custom_call.1} parent=1 // pred_check_branch
      %38 = sbr.rel (0) target = $region37
    $region36: #{tpu_custom_call.1} parent=1 // pred_region
      _
    $region37: #{tpu_custom_call.1} parent=1 // pred_fallthru
      _
    // Predicated region
    $region38: #{tpu_custom_call.1} parent=1 // pred_check
      _
    $region39: #{tpu_custom_call.1} parent=1 // pred_check_branch
      %40 = sbr.rel (0) target = $region41
    $region40: #{tpu_custom_call.1} parent=1 // pred_region
      _
    $region41: #{tpu_custom_call.1} parent=1 // pred_fallthru
      _
    // Predicated region
    $region42: #{tpu_custom_call.1} parent=1 // pred_check
      _
    $region43: #{tpu_custom_call.1} parent=1 // pred_check_branch
      %42 = sbr.rel (0) target = $region45
    $region44: #{tpu_custom_call.1} parent=1 // pred_region
      _
    $region45: #{tpu_custom_call.1} parent=1 // pred_fallthru
      _
    // Predicated region
    $region46: #{tpu_custom_call.1} parent=1 // pred_check
      _
    $region47: #{tpu_custom_call.1} parent=1 // pred_check_branch
      %44 = sbr.rel (0) target = $region49
    $region48: #{tpu_custom_call.1} parent=1 // pred_region
      _
    $region49: #{tpu_custom_call.1} parent=1 // pred_fallthru
      _
    // Predicated region
    $region50: #{tpu_custom_call.1} parent=1 // pred_check
      _
    $region51: #{tpu_custom_call.1} parent=1 // pred_check_branch
      %46 = sbr.rel (0) target = $region53
    $region52: #{tpu_custom_call.1} parent=1 // pred_region
      _
    $region53: #{tpu_custom_call.1} parent=1 // pred_fallthru
      _
    // Predicated region
    $region54: #{tpu_custom_call.1} parent=1 // pred_check
      _
    $region55: #{tpu_custom_call.1} parent=1 // pred_check_branch
      %48 = sbr.rel (0) target = $region57
    $region56: #{tpu_custom_call.1} parent=1 // pred_region
      _
    $region57: #{tpu_custom_call.1} parent=1 // pred_fallthru
      _
    // Predicated region
    $region58: #{tpu_custom_call.1} parent=1 // pred_check
      _
    $region59: #{tpu_custom_call.1} parent=1 // pred_check_branch
      %50 = sbr.rel (0) target = $region61
    $region60: #{tpu_custom_call.1} parent=1 // pred_region
      _
    $region61: #{tpu_custom_call.1} parent=1 // pred_fallthru
      _
    %v52 = vld [vmem:[%s0] sm:$0xf]
    %v53 = vld [vmem:[%s1] sm:$0xf]
    %v54 = vld [vmem:[%s1 + $0x4] sm:$0xf]
    %v55 = vld [vmem:[%s2] sm:$0xff]
    %v56 = vld [vmem:[%s2 + $0x8] sm:$0xff]
    %58 = vset.pattern.permute.xlu0 0
    %59 = vperm.xlu0 %58, %v55
    %v60 = vpop.permute.xlu0 %59
    %63 = vset.pattern.permute.xlu0 0
    %64 = vperm.xlu0 %63, %v56
    %v65 = vpop.permute.xlu0 %64
    %v69 = vunpack.c.l.b16 %v53
    %v70 = vunpack.c.l.b16 %v54
    %v71 = vpack.c.b16 %v70, %v69
    %vm72 = vcmask 64512
    %v74 = vsel %vm72, %v71, 0
    %vm76 = vcmask 1043456
    %v78 = vsel %vm76, %v52, 0
    %80 = vmatprep.subr.bf16.mxu0 0
    %81 = vmatpush1.bf16.msra.mxu0 %v78
    %82 = vmatprep.subr.bf16.mxu0 0
    %83 = vmatpush1.bf16.msra.mxu0 0
    %84 = vmatprep.subr.bf16.mxu0 0
    %85 = vmatpush1.bf16.msra.mxu0 0
    %86 = vmatprep.subr.bf16.mxu0 0
    %87 = vmatpush1.bf16.msra.mxu0 0
    %88 = vmatprep.subr.bf16.mxu0 0
    %89 = vmatpush1.bf16.msra.mxu0 0
    %90 = vmatprep.subr.bf16.mxu0 0
    %91 = vmatpush1.bf16.msra.mxu0 0
    %92 = vmatprep.subr.bf16.mxu0 0
    %93 = vmatpush1.bf16.msra.mxu0 0
    %94 = vmatprep.subr.bf16.mxu0 0
    %95 = vmatpush1.bf16.msra.mxu0 0
    %96 = vmatprep.subr.bf16.mxu0 0
    %97 = vmatpush1.bf16.msra.mxu0 0
    %98 = vmatprep.subr.bf16.mxu0 0
    %99 = vmatpush1.bf16.msra.mxu0 0
    %100 = vmatprep.subr.bf16.mxu0 0
    %101 = vmatpush1.bf16.msra.mxu0 0
    %102 = vmatprep.subr.bf16.mxu0 0
    %103 = vmatpush1.bf16.msra.mxu0 0
    %104 = vmatprep.subr.bf16.mxu0 0
    %105 = vmatpush1.bf16.msra.mxu0 0
    %106 = vmatprep.subr.bf16.mxu0 0
    %107 = vmatpush1.bf16.msra.mxu0 0
    %108 = vmatprep.subr.bf16.mxu0 0
    %109 = vmatpush1.bf16.msra.mxu0 0
    %110 = vmatprep.subr.bf16.mxu0 0
    %111 = vmatpush1.bf16.msra.mxu0 0
    %112 = vmatprep.mubr.bf16.mxu0 0
    %113 = vmatmul.mubr.bf16.gmra.mrb[0].mxu0 %v74
    %v114 = vpop.f32.mrb[0].mxu0
    %v115 = vadd.f32 %v60, %v114
    %v116 = vpop.f32.mrb[0].mxu0
    %v117 = vpop.f32.mrb[0].mxu0
    %v118 = vadd.f32 %v65, %v117
    %v119 = vpop.f32.mrb[0].mxu0
    %120 = vdwg.mxu0
    %v121 = vmax.f32 %v115, 0.0
    %v122 = vmax.f32 %v118, 0.0
    %v123 = vpack.c.bf16 %v122, %v121
    %v124 = vld [vmem:[%s3] sm:$0xf]
    %v125 = vld [vmem:[%s3 + $0x4] sm:$0xf]
    %v126 = vld [vmem:[%s4] sm:$0xff]
    %v127 = vld [vmem:[%s4 + $0x8] sm:$0xff]
    %129 = vset.pattern.permute.xlu0 0
    %130 = vperm.xlu0 %129, %v126
    %v131 = vpop.permute.xlu0 %130
    %134 = vset.pattern.permute.xlu0 0
    %135 = vperm.xlu0 %134, %v127
    %v136 = vpop.permute.xlu0 %135
    %v140 = vunpack.c.l.b16 %v124
    %v141 = vunpack.c.l.b16 %v125
    %v142 = vpack.c.b16 %v141, %v140
    %vm143 = vcmask 130048
    %v145 = vsel %vm143, %v142, 0
    %147 = vmatprep.subr.bf16.mxu0 0
    %148 = vmatpush1.bf16.msra.mxu0 %v123
    %149 = vmatprep.subr.bf16.mxu0 0
    %150 = vmatpush1.bf16.msra.mxu0 0
    %151 = vmatprep.subr.bf16.mxu0 0
    %152 = vmatpush1.bf16.msra.mxu0 0
    %153 = vmatprep.subr.bf16.mxu0 0
    %154 = vmatpush1.bf16.msra.mxu0 0
    %155 = vmatprep.subr.bf16.mxu0 0
    %156 = vmatpush1.bf16.msra.mxu0 0
    %157 = vmatprep.subr.bf16.mxu0 0
    %158 = vmatpush1.bf16.msra.mxu0 0
    %159 = vmatprep.subr.bf16.mxu0 0
    %160 = vmatpush1.bf16.msra.mxu0 0
    %161 = vmatprep.subr.bf16.mxu0 0
    %162 = vmatpush1.bf16.msra.mxu0 0
    %163 = vmatprep.subr.bf16.mxu0 0
    %164 = vmatpush1.bf16.msra.mxu0 0
    %165 = vmatprep.subr.bf16.mxu0 0
    %166 = vmatpush1.bf16.msra.mxu0 0
    %167 = vmatprep.subr.bf16.mxu0 0
    %168 = vmatpush1.bf16.msra.mxu0 0
    %169 = vmatprep.subr.bf16.mxu0 0
    %170 = vmatpush1.bf16.msra.mxu0 0
    %171 = vmatprep.subr.bf16.mxu0 0
    %172 = vmatpush1.bf16.msra.mxu0 0
    %173 = vmatprep.subr.bf16.mxu0 0
    %174 = vmatpush1.bf16.msra.mxu0 0
    %175 = vmatprep.subr.bf16.mxu0 0
    %176 = vmatpush1.bf16.msra.mxu0 0
    %177 = vmatprep.subr.bf16.mxu0 0
    %178 = vmatpush1.bf16.msra.mxu0 0
    %179 = vmatprep.mubr.bf16.mxu0 0
    %180 = vmatmul.mubr.bf16.gmra.mrb[0].mxu0 %v145
    %v181 = vpop.f32.mrb[0].mxu0
    %v182 = vadd.f32 %v131, %v181
    %v183 = vpop.f32.mrb[0].mxu0
    %v184 = vpop.f32.mrb[0].mxu0
    %v185 = vadd.f32 %v136, %v184
    %v186 = vpop.f32.mrb[0].mxu0
    %187 = vdwg.mxu0
    %v188 = vmax.f32 %v182, 0.0
    %v189 = vmax.f32 %v185, 0.0
    %v190 = vpack.c.bf16 %v189, %v188
    %v191 = vld [vmem:[%s5] sm:$0xf]
    %v192 = vld [vmem:[%s5 + $0x4] sm:$0xf]
    %v193 = vld [vmem:[%s6] sm:$0xff]
    %v194 = vld [vmem:[%s6 + $0x8] sm:$0xff]
    %196 = vset.pattern.permute.xlu0 0
    %197 = vperm.xlu0 %196, %v193
    %v198 = vpop.permute.xlu0 %197
    %201 = vset.pattern.permute.xlu0 0
    %202 = vperm.xlu0 %201, %v194
    %v203 = vpop.permute.xlu0 %202
    %v207 = vunpack.c.l.b16 %v191
    %v208 = vunpack.c.l.b16 %v192
    %v209 = vpack.c.b16 %v208, %v207
    %v211 = vsel %vm143, %v209, 0
    %213 = vmatprep.subr.bf16.mxu0 0
    %214 = vmatpush1.bf16.msra.mxu0 %v190
    %215 = vmatprep.subr.bf16.mxu0 0
    %216 = vmatpush1.bf16.msra.mxu0 0
    %217 = vmatprep.subr.bf16.mxu0 0
    %218 = vmatpush1.bf16.msra.mxu0 0
    %219 = vmatprep.subr.bf16.mxu0 0
    %220 = vmatpush1.bf16.msra.mxu0 0
    %221 = vmatprep.subr.bf16.mxu0 0
    %222 = vmatpush1.bf16.msra.mxu0 0
    %223 = vmatprep.subr.bf16.mxu0 0
    %224 = vmatpush1.bf16.msra.mxu0 0
    %225 = vmatprep.subr.bf16.mxu0 0
    %226 = vmatpush1.bf16.msra.mxu0 0
    %227 = vmatprep.subr.bf16.mxu0 0
    %228 = vmatpush1.bf16.msra.mxu0 0
    %229 = vmatprep.subr.bf16.mxu0 0
    %230 = vmatpush1.bf16.msra.mxu0 0
    %231 = vmatprep.subr.bf16.mxu0 0
    %232 = vmatpush1.bf16.msra.mxu0 0
    %233 = vmatprep.subr.bf16.mxu0 0
    %234 = vmatpush1.bf16.msra.mxu0 0
    %235 = vmatprep.subr.bf16.mxu0 0
    %236 = vmatpush1.bf16.msra.mxu0 0
    %237 = vmatprep.subr.bf16.mxu0 0
    %238 = vmatpush1.bf16.msra.mxu0 0
    %239 = vmatprep.subr.bf16.mxu0 0
    %240 = vmatpush1.bf16.msra.mxu0 0
    %241 = vmatprep.subr.bf16.mxu0 0
    %242 = vmatpush1.bf16.msra.mxu0 0
    %243 = vmatprep.subr.bf16.mxu0 0
    %244 = vmatpush1.bf16.msra.mxu0 0
    %245 = vmatprep.mubr.bf16.mxu0 0
    %246 = vmatmul.mubr.bf16.gmra.mrb[0].mxu0 %v211
    %v247 = vpop.f32.mrb[0].mxu0
    %v248 = vadd.f32 %v198, %v247
    %v249 = vpop.f32.mrb[0].mxu0
    %v250 = vpop.f32.mrb[0].mxu0
    %v251 = vadd.f32 %v203, %v250
    %v252 = vpop.f32.mrb[0].mxu0
    %253 = vdwg.mxu0
    %v254 = vmax.f32 %v248, 0.0
    %v255 = vmax.f32 %v251, 0.0
    %v256 = vpack.c.bf16 %v255, %v254
    %v257 = vld [vmem:[%s7] sm:$0xf]
    %v258 = vld [vmem:[%s7 + $0x4] sm:$0xf]
    %v259 = vld [vmem:[%s8] sm:$0xff]
    %v260 = vld [vmem:[%s8 + $0x8] sm:$0xff]
    %262 = vset.pattern.permute.xlu0 0
    %263 = vperm.xlu0 %262, %v259
    %v264 = vpop.permute.xlu0 %263
    %267 = vset.pattern.permute.xlu0 0
    %268 = vperm.xlu0 %267, %v260
    %v269 = vpop.permute.xlu0 %268
    %v273 = vunpack.c.l.b16 %v257
    %v274 = vunpack.c.l.b16 %v258
    %v275 = vpack.c.b16 %v274, %v273
    %v277 = vsel %vm143, %v275, 0
    %279 = vmatprep.subr.bf16.mxu0 0
    %280 = vmatpush1.bf16.msra.mxu0 %v256
    %281 = vmatprep.subr.bf16.mxu0 0
    %282 = vmatpush1.bf16.msra.mxu0 0
    %283 = vmatprep.subr.bf16.mxu0 0
    %284 = vmatpush1.bf16.msra.mxu0 0
    %285 = vmatprep.subr.bf16.mxu0 0
    %286 = vmatpush1.bf16.msra.mxu0 0
    %287 = vmatprep.subr.bf16.mxu0 0
    %288 = vmatpush1.bf16.msra.mxu0 0
    %289 = vmatprep.subr.bf16.mxu0 0
    %290 = vmatpush1.bf16.msra.mxu0 0
    %291 = vmatprep.subr.bf16.mxu0 0
    %292 = vmatpush1.bf16.msra.mxu0 0
    %293 = vmatprep.subr.bf16.mxu0 0
    %294 = vmatpush1.bf16.msra.mxu0 0
    %295 = vmatprep.subr.bf16.mxu0 0
    %296 = vmatpush1.bf16.msra.mxu0 0
    %297 = vmatprep.subr.bf16.mxu0 0
    %298 = vmatpush1.bf16.msra.mxu0 0
    %299 = vmatprep.subr.bf16.mxu0 0
    %300 = vmatpush1.bf16.msra.mxu0 0
    %301 = vmatprep.subr.bf16.mxu0 0
    %302 = vmatpush1.bf16.msra.mxu0 0
    %303 = vmatprep.subr.bf16.mxu0 0
    %304 = vmatpush1.bf16.msra.mxu0 0
    %305 = vmatprep.subr.bf16.mxu0 0
    %306 = vmatpush1.bf16.msra.mxu0 0
    %307 = vmatprep.subr.bf16.mxu0 0
    %308 = vmatpush1.bf16.msra.mxu0 0
    %309 = vmatprep.subr.bf16.mxu0 0
    %310 = vmatpush1.bf16.msra.mxu0 0
    %311 = vmatprep.mubr.bf16.mxu0 0
    %312 = vmatmul.mubr.bf16.gmra.mrb[0].mxu0 %v277
    %v313 = vpop.f32.mrb[0].mxu0
    %v314 = vadd.f32 %v264, %v313
    %v315 = vpop.f32.mrb[0].mxu0
    %v316 = vpop.f32.mrb[0].mxu0
    %v317 = vadd.f32 %v269, %v316
    %v318 = vpop.f32.mrb[0].mxu0
    %319 = vdwg.mxu0
    %v320 = vmax.f32 %v314, 0.0
    %v321 = vmax.f32 %v317, 0.0
    %v322 = vpack.c.bf16 %v321, %v320
    %v323 = vld [vmem:[%s9] sm:$0xf]
    %v324 = vld [vmem:[%s9 + $0x4] sm:$0xf]
    %v325 = vld [vmem:[%s10] sm:$0xff]
    %v326 = vld [vmem:[%s10 + $0x8] sm:$0xff]
    %328 = vset.pattern.permute.xlu0 0
    %329 = vperm.xlu0 %328, %v325
    %v330 = vpop.permute.xlu0 %329
    %333 = vset.pattern.permute.xlu0 0
    %334 = vperm.xlu0 %333, %v326
    %v335 = vpop.permute.xlu0 %334
    %v339 = vunpack.c.l.b16 %v323
    %v340 = vunpack.c.l.b16 %v324
    %v341 = vpack.c.b16 %v340, %v339
    %v343 = vsel %vm143, %v341, 0
    %345 = vmatprep.subr.bf16.mxu0 0
    %346 = vmatpush1.bf16.msra.mxu0 %v322
    %347 = vmatprep.subr.bf16.mxu0 0
    %348 = vmatpush1.bf16.msra.mxu0 0
    %349 = vmatprep.subr.bf16.mxu0 0
    %350 = vmatpush1.bf16.msra.mxu0 0
    %351 = vmatprep.subr.bf16.mxu0 0
    %352 = vmatpush1.bf16.msra.mxu0 0
    %353 = vmatprep.subr.bf16.mxu0 0
    %354 = vmatpush1.bf16.msra.mxu0 0
    %355 = vmatprep.subr.bf16.mxu0 0
    %356 = vmatpush1.bf16.msra.mxu0 0
    %357 = vmatprep.subr.bf16.mxu0 0
    %358 = vmatpush1.bf16.msra.mxu0 0
    %359 = vmatprep.subr.bf16.mxu0 0
    %360 = vmatpush1.bf16.msra.mxu0 0
    %361 = vmatprep.subr.bf16.mxu0 0
    %362 = vmatpush1.bf16.msra.mxu0 0
    %363 = vmatprep.subr.bf16.mxu0 0
    %364 = vmatpush1.bf16.msra.mxu0 0
    %365 = vmatprep.subr.bf16.mxu0 0
    %366 = vmatpush1.bf16.msra.mxu0 0
    %367 = vmatprep.subr.bf16.mxu0 0
    %368 = vmatpush1.bf16.msra.mxu0 0
    %369 = vmatprep.subr.bf16.mxu0 0
    %370 = vmatpush1.bf16.msra.mxu0 0
    %371 = vmatprep.subr.bf16.mxu0 0
    %372 = vmatpush1.bf16.msra.mxu0 0
    %373 = vmatprep.subr.bf16.mxu0 0
    %374 = vmatpush1.bf16.msra.mxu0 0
    %375 = vmatprep.subr.bf16.mxu0 0
    %376 = vmatpush1.bf16.msra.mxu0 0
    %377 = vmatprep.mubr.bf16.mxu0 0
    %378 = vmatmul.mubr.bf16.gmra.mrb[0].mxu0 %v343
    %v379 = vpop.f32.mrb[0].mxu0
    %v380 = vadd.f32 %v330, %v379
    %v381 = vpop.f32.mrb[0].mxu0
    %v382 = vpop.f32.mrb[0].mxu0
    %v383 = vadd.f32 %v335, %v382
    %v384 = vpop.f32.mrb[0].mxu0
    %385 = vdwg.mxu0
    %v386 = vmax.f32 %v380, 0.0
    %v387 = vmax.f32 %v383, 0.0
    %v388 = vpack.c.bf16 %v387, %v386
    %v389 = vld [vmem:[%s11] sm:$0xf]
    %v390 = vld [vmem:[%s11 + $0x4] sm:$0xf]
    %v391 = vld [vmem:[%s12] sm:$0xff]
    %v392 = vld [vmem:[%s12 + $0x8] sm:$0xff]
    %394 = vset.pattern.permute.xlu0 0
    %395 = vperm.xlu0 %394, %v391
    %v396 = vpop.permute.xlu0 %395
    %399 = vset.pattern.permute.xlu0 0
    %400 = vperm.xlu0 %399, %v392
    %v401 = vpop.permute.xlu0 %400
    %v405 = vunpack.c.l.b16 %v389
    %v406 = vunpack.c.l.b16 %v390
    %v407 = vpack.c.b16 %v406, %v405
    %v409 = vsel %vm143, %v407, 0
    %411 = vmatprep.subr.bf16.mxu0 0
    %412 = vmatpush1.bf16.msra.mxu0 %v388
    %413 = vmatprep.subr.bf16.mxu0 0
    %414 = vmatpush1.bf16.msra.mxu0 0
    %415 = vmatprep.subr.bf16.mxu0 0
    %416 = vmatpush1.bf16.msra.mxu0 0
    %417 = vmatprep.subr.bf16.mxu0 0
    %418 = vmatpush1.bf16.msra.mxu0 0
    %419 = vmatprep.subr.bf16.mxu0 0
    %420 = vmatpush1.bf16.msra.mxu0 0
    %421 = vmatprep.subr.bf16.mxu0 0
    %422 = vmatpush1.bf16.msra.mxu0 0
    %423 = vmatprep.subr.bf16.mxu0 0
    %424 = vmatpush1.bf16.msra.mxu0 0
    %425 = vmatprep.subr.bf16.mxu0 0
    %426 = vmatpush1.bf16.msra.mxu0 0
    %427 = vmatprep.subr.bf16.mxu0 0
    %428 = vmatpush1.bf16.msra.mxu0 0
    %429 = vmatprep.subr.bf16.mxu0 0
    %430 = vmatpush1.bf16.msra.mxu0 0
    %431 = vmatprep.subr.bf16.mxu0 0
    %432 = vmatpush1.bf16.msra.mxu0 0
    %433 = vmatprep.subr.bf16.mxu0 0
    %434 = vmatpush1.bf16.msra.mxu0 0
    %435 = vmatprep.subr.bf16.mxu0 0
    %436 = vmatpush1.bf16.msra.mxu0 0
    %437 = vmatprep.subr.bf16.mxu0 0
    %438 = vmatpush1.bf16.msra.mxu0 0
    %439 = vmatprep.subr.bf16.mxu0 0
    %440 = vmatpush1.bf16.msra.mxu0 0
    %441 = vmatprep.subr.bf16.mxu0 0
    %442 = vmatpush1.bf16.msra.mxu0 0
    %443 = vmatprep.mubr.bf16.mxu0 0
    %444 = vmatmul.mubr.bf16.gmra.mrb[0].mxu0 %v409
    %v445 = vpop.f32.mrb[0].mxu0
    %v446 = vadd.f32 %v396, %v445
    %v447 = vpop.f32.mrb[0].mxu0
    %v448 = vpop.f32.mrb[0].mxu0
    %v449 = vadd.f32 %v401, %v448
    %v450 = vpop.f32.mrb[0].mxu0
    %451 = vdwg.mxu0
    %v452 = vmax.f32 %v446, 0.0
    %v453 = vmax.f32 %v449, 0.0
    %v454 = vpack.c.bf16 %v453, %v452
    %v455 = vld [vmem:[%s13] sm:$0xf]
    %v456 = vld [vmem:[%s14] sm:$0xff]
    %458 = vset.pattern.permute.xlu0 0
    %459 = vperm.xlu0 %458, %v456
    %v460 = vpop.permute.xlu0 %459
    %v463 = vsel %vm143, %v455, 0
    %465 = vmatprep.subr.bf16.mxu0 0
    %466 = vmatpush1.bf16.msra.mxu0 %v454
    %467 = vmatprep.subr.bf16.mxu0 0
    %468 = vmatpush1.bf16.msra.mxu0 0
    %469 = vmatprep.subr.bf16.mxu0 0
    %470 = vmatpush1.bf16.msra.mxu0 0
    %471 = vmatprep.subr.bf16.mxu0 0
    %472 = vmatpush1.bf16.msra.mxu0 0
    %473 = vmatprep.subr.bf16.mxu0 0
    %474 = vmatpush1.bf16.msra.mxu0 0
    %475 = vmatprep.subr.bf16.mxu0 0
    %476 = vmatpush1.bf16.msra.mxu0 0
    %477 = vmatprep.subr.bf16.mxu0 0
    %478 = vmatpush1.bf16.msra.mxu0 0
    %479 = vmatprep.subr.bf16.mxu0 0
    %480 = vmatpush1.bf16.msra.mxu0 0
    %481 = vmatprep.subr.bf16.mxu0 0
    %482 = vmatpush1.bf16.msra.mxu0 0
    %483 = vmatprep.subr.bf16.mxu0 0
    %484 = vmatpush1.bf16.msra.mxu0 0
    %485 = vmatprep.subr.bf16.mxu0 0
    %486 = vmatpush1.bf16.msra.mxu0 0
    %487 = vmatprep.subr.bf16.mxu0 0
    %488 = vmatpush1.bf16.msra.mxu0 0
    %489 = vmatprep.subr.bf16.mxu0 0
    %490 = vmatpush1.bf16.msra.mxu0 0
    %491 = vmatprep.subr.bf16.mxu0 0
    %492 = vmatpush1.bf16.msra.mxu0 0
    %493 = vmatprep.subr.bf16.mxu0 0
    %494 = vmatpush1.bf16.msra.mxu0 0
    %495 = vmatprep.subr.bf16.mxu0 0
    %496 = vmatpush1.bf16.msra.mxu0 0
    %497 = vmatprep.mubr.bf16.mxu0 0
    %498 = vmatmul.mubr.bf16.gmra.mrb[0].mxu0 %v463
    %v499 = vpop.f32.mrb[0].mxu0
    %v500 = vadd.f32 %v460, %v499
    %v501 = vpop.f32.mrb[0].mxu0
    %v502 = vpop.f32.mrb[0].mxu0
    %v503 = vpop.f32.mrb[0].mxu0
    %504 = vdwg.mxu0
    %505 = vst [vmem:[#allocation2] sm:$0xff] %v500
    // Predicated region
    $region62: #{tpu_custom_call.1} parent=1 // pred_check
      _
    $region63: #{tpu_custom_call.1} parent=1 // pred_check_branch
      %507 = sbr.rel (0) target = $region65
    $region64: #{tpu_custom_call.1} parent=1 // pred_region
      %s509 = ssub.s32 128, 128
      %510 = vsyncadd [#allocation3], %s509
      %s512 = sshll.u32 [#allocation2], 4
      %s513 = int_to_ptr.vmem [resolvable:$true] %s512
      %515 = dma.vmem_to_hbm [thread:$0]  %s513, 128, %s15, [#allocation3]
    $region65: #{tpu_custom_call.1} parent=1 // pred_fallthru
      _
    // Predicated region
    $region66: #{tpu_custom_call.1} parent=1 // pred_check
      _
    $region67: #{tpu_custom_call.1} parent=1 // pred_check_branch
      %517 = sbr.rel (0) target = $region69
    $region68: #{tpu_custom_call.1} parent=1 // pred_region
      %518 = dma.done [#allocation3], 128
    $region69: #{tpu_custom_call.1} parent=1 // pred_fallthru
      _
    %519 = vsyncpa [#allocation3], 1

</llo_original>
